<compile_context>
chip_gen: v7x
topology: tpu7x:2x2x1
jax: 0.10.0
libtpu: 0.0.40
codegen_flags: <defaults>
</compile_context>

<pallas_src>
import functools

import jax
import jax.numpy as jnp
from jax import lax
from jax.experimental import pallas as pl
from jax.experimental.pallas import tpu as pltpu

_LANES = 128
_SUBLANES = 8
_CHUNK_ROWS = 64       # rows per register-resident inner chunk (8 f32 vregs / array)
_MAX_BLOCK_ROWS = 512  # 512x128 f32 pred block = 256 KiB; x2 bufs + int8 labels < 1 MiB VMEM


def _seg_loss_kernel(sid_ref, pred_ref, lbl_ref, out_ref, acc_ref,
                     *, num_scales, block_rows):
    """Accumulates per-scale [pos_sum, pos_cnt, neg_sum, neg_cnt].

    acc_ref : VMEM (num_scales*4, 8, 128) f32 lane-parallel partial sums.
    out_ref : SMEM (num_scales, 4) f32, written once in the epilogue.
    Labels: 0 = target==0, 1 = target==1, 2 = ignore (also the padding value),
    so padded / ignored elements contribute exactly 0 to every sum and count.
    """
    i = pl.program_id(0)

    @pl.when(i == 0)
    def _init():
        acc_ref[...] = jnp.zeros_like(acc_ref)

    sid = sid_ref[i]  # which scale this block belongs to
    num_chunks = block_rows // _CHUNK_ROWS

    def fold(x):
        # (chunk_rows, 128) -> (8, 128): whole-vreg elementwise adds, no
        # cross-lane work in the hot loop.
        return jnp.sum(x.reshape(-1, _SUBLANES, _LANES), axis=0)

    def chunk_body(c, carry):
        pos_s, pos_c, neg_s, neg_c = carry
        r0 = pl.multiple_of(c * _CHUNK_ROWS, _CHUNK_ROWS)
        p = pred_ref[pl.ds(r0, _CHUNK_ROWS), :].astype(jnp.float32)
        lblf = lbl_ref[pl.ds(r0, _CHUNK_ROWS), :].astype(jnp.float32)
        pos_f = (lblf == 1.0).astype(jnp.float32)
        neg_f = (lblf == 0.0).astype(jnp.float32)
        # target value is 1.0 on positive pixels, 0.0 elsewhere (labels 0/2);
        # on label-2 pixels sl1 is masked out by pos_f/neg_f anyway.
        d = p - pos_f
        ad = jnp.abs(d)
        # smooth_l1_loss, reduction='none', beta=1.0
        sl1 = jnp.where(ad < 1.0, 0.5 * d * d, ad - 0.5)
        return (pos_s + fold(sl1 * pos_f), pos_c + fold(pos_f),
                neg_s + fold(sl1 * neg_f), neg_c + fold(neg_f))

    zero = jnp.zeros((_SUBLANES, _LANES), jnp.float32)
    pos_s, pos_c, neg_s, neg_c = lax.fori_loop(
        0, num_chunks, chunk_body, (zero, zero, zero, zero), unroll=True)

    # One accumulator update per block (base hoisted).
    base = sid * 4
    acc_ref[base] += pos_s
    acc_ref[base + 1] += pos_c
    acc_ref[base + 2] += neg_s
    acc_ref[base + 3] += neg_c

    @pl.when(i == pl.num_programs(0) - 1)
    def _finish():
        for s in range(num_scales):
            for q in range(4):
                out_ref[s, q] = jnp.sum(acc_ref[s * 4 + q])


def _nearest_resize(x, h, w):
    """F.interpolate(..., mode='nearest') for an NCHW tensor (pure gather)."""
    N, C, H, W = x.shape
    rows = (jnp.arange(h) * H) // h
    cols = (jnp.arange(w) * W) // w
    return x[:, :, rows, :][:, :, :, cols]


def _round_up(x, m):
    return ((x + m - 1) // m) * m


@functools.partial(jax.jit, static_argnums=(2, 3))
def text_seg_loss(preds, target, ignore_value, multiscale_weights=(5, 6, 10)):
    """Pallas implementation of TextSegLoss.forward (preds: list of NCHW)."""
    pairs = list(zip(preds, multiscale_weights))
    num_scales = len(pairs)
    ignore_thresh = ignore_value / 255.0

    # One block size for all scales (each scale padded up to a multiple of it).
    rows_needed = max(pl.cdiv(int(p.size), _LANES) for p, _ in pairs)
    block_rows = min(_MAX_BLOCK_ROWS, _round_up(max(rows_needed, 1), _CHUNK_ROWS))

    # Stream preds in their storage dtype; only unify if the scales disagree
    # (they are concatenated into a single slab).
    pred_dtypes = {p.dtype for p, _ in pairs}
    pred_dtype = (pairs[0][0].dtype if len(pred_dtypes) == 1
                  else jnp.result_type(*pred_dtypes))

    # Encode the target ONCE as int8 class labels; nearest resize is a pure
    # gather, so encoding commutes with it and the per-scale gathers + kernel
    # stream 1 B/elem instead of 4 B/elem.
    lbl_full = jnp.where(target == 1.0, 1,
                         jnp.where(target == 0.0, 0, 2)).astype(jnp.int8)

    pred_slabs, lbl_slabs, scale_ids = [], [], []
    for s, (pred_, _w) in enumerate(pairs):
        h, w = pred_.shape[2], pred_.shape[3]
        lbl_ = _nearest_resize(lbl_full, h, w)

        total = int(pred_.size)
        rows = _round_up(max(pl.cdiv(total, _LANES), 1), block_rows)
        padded = rows * _LANES

        pred_flat = pred_.reshape(-1)
        if pred_flat.dtype != pred_dtype:
            pred_flat = pred_flat.astype(pred_dtype)
        lbl_flat = lbl_.reshape(-1)
        if padded > total:
            # Padding labels are 2 (ignore) -> zero contribution everywhere;
            # pred padding value is irrelevant (masked), use 0.
            pred_flat = jnp.pad(pred_flat, (0, padded - total), constant_values=0)
            lbl_flat = jnp.pad(lbl_flat, (0, padded - total), constant_values=2)
        pred_slabs.append(pred_flat.reshape(rows, _LANES))
        lbl_slabs.append(lbl_flat.reshape(rows, _LANES))
        scale_ids.extend([s] * (rows // block_rows))

    pred_all = jnp.concatenate(pred_slabs, axis=0)
    lbl_all = jnp.concatenate(lbl_slabs, axis=0)
    sid = jnp.asarray(scale_ids, jnp.int32)
    num_blocks = pred_all.shape[0] // block_rows

    kernel = functools.partial(_seg_loss_kernel,
                               num_scales=num_scales,
                               block_rows=block_rows)
    sums = pl.pallas_call(
        kernel,
        out_shape=jax.ShapeDtypeStruct((num_scales, 4), jnp.float32),
        grid_spec=pltpu.PrefetchScalarGridSpec(
            num_scalar_prefetch=1,
            grid=(num_blocks,),
            in_specs=[
                pl.BlockSpec((block_rows, _LANES), lambda i, sid: (i, 0)),  # pred
                pl.BlockSpec((block_rows, _LANES), lambda i, sid: (i, 0)),  # int8 labels
            ],
            out_specs=pl.BlockSpec(memory_space=pltpu.SMEM),
            scratch_shapes=[
                pltpu.VMEM((num_scales * 4, _SUBLANES, _LANES), jnp.float32),
            ],
        ),
        compiler_params=pltpu.CompilerParams(
            dimension_semantics=("arbitrary",)),
    )(sid, pred_all, lbl_all)

    l1_loss = jnp.float32(0.0)
    pos_loss = jnp.float32(0.0)
    neg_loss = jnp.float32(0.0)
    for s, (_pred_, weight) in enumerate(pairs):
        pos_sum, pos_cnt = sums[s, 0], sums[s, 1]
        neg_sum, neg_cnt = sums[s, 2], sums[s, 3]
        # keep = (target != ignore); within the {0,1,ignore} label domain that
        # is pos|neg, minus whichever class the ignore label coincides with
        # (decided statically from ignore_value).
        if ignore_thresh == 1.0:
            keep_sum, keep_cnt = neg_sum, neg_cnt
        elif ignore_thresh == 0.0:
            keep_sum, keep_cnt = pos_sum, pos_cnt
        else:
            keep_sum, keep_cnt = pos_sum + neg_sum, pos_cnt + neg_cnt
        # pos: explicit 0 when no positive pixels (matches torch branch)
        pos = jnp.where(pos_cnt > 0, pos_sum / jnp.maximum(pos_cnt, 1.0), 0.0)
        # neg / l1: plain mean (nan on empty set, like torch .mean() of empty)
        neg = neg_sum / neg_cnt
        l1 = keep_sum / keep_cnt
        l1_loss = l1_loss + l1 * weight
        pos_loss = pos_loss + pos * weight
        neg_loss = neg_loss + neg * weight
    return {"l1_loss": l1_loss, "pos_loss": pos_loss, "neg_loss": neg_loss}


def _reference(preds, target, ignore_value, multiscale_weights=(5, 6, 10)):
    """Pure-JAX reference mirroring the PyTorch module."""
    ignore_thresh = ignore_value / 255.0
    l1_t = pos_t = neg_t = 0.0
    for pred_, weight in zip(preds, multiscale_weights):
        h, w = pred_.shape[2], pred_.shape[3]
        tgt_ = _nearest_resize(target, h, w).astype(jnp.float32)
        p = pred_.astype(jnp.float32)
        d = p - tgt_
        ad = jnp.abs(d)
        sl1 = jnp.where(ad < 1.0, 0.5 * d * d, ad - 0.5)
        pos_m = tgt_ == 1.0
        neg_m = tgt_ == 0.0
        keep_m = tgt_ != ignore_thresh
        pos_cnt = jnp.sum(pos_m)
        pos = jnp.where(pos_cnt > 0,
                        jnp.sum(jnp.where(pos_m, sl1, 0.0)) / jnp.maximum(pos_cnt, 1),
                        0.0)
        neg = jnp.sum(jnp.where(neg_m, sl1, 0.0)) / jnp.sum(neg_m)
        l1 = jnp.sum(jnp.where(keep_m, sl1, 0.0)) / jnp.sum(keep_m)
        l1_t = l1_t + l1 * weight
        pos_t = pos_t + pos * weight
        neg_t = neg_t + neg * weight
    return {"l1_loss": l1_t, "pos_loss": pos_t, "neg_loss": neg_t}


if __name__ == "__main__":
    key = jax.random.PRNGKey(0)
    k_t, k_p0, k_p1, k_p2 = jax.random.split(key, 4)

    N, C, H, W = 2, 1, 16, 16

    # target class labels in {0, 1, 2}; pin a few pixels that every pyramid
    # scale samples so each class is guaranteed to be present at every scale.
    labels3 = jax.random.randint(k_t, (N, C, H, W), 0, 3)
    labels3 = labels3.at[:, :, 0, 0].set(0)
    labels3 = labels3.at[:, :, 0, 4].set(1)
    labels3 = labels3.at[:, :, 4, 0].set(2)

    # three prediction scales (NCHW), matching multiscale_weights=(5, 6, 10)
    preds = [
        0.5 * jax.random.normal(k_p0, (N, C, 16, 16), jnp.float32),
        0.5 * jax.random.normal(k_p1, (N, C, 8, 8), jnp.float32),
        0.5 * jax.random.normal(k_p2, (N, C, 4, 4), jnp.float32),
    ]

    def label_to_target(lbl, ignore_value):
        return jnp.where(lbl == 0, 0.0,
                         jnp.where(lbl == 1, 1.0, ignore_value / 255.0)
                         ).astype(jnp.float32)

    binary_target = (labels3 == 1).astype(jnp.float32)
    test_cases = [
        (128, label_to_target(labels3, 128)),  # target in {0, 1, ignore/255}
        (255, binary_target),                  # ignore label coincides with the positive label
        (0, binary_target),                    # ignore label coincides with the negative label
    ]

    for ignore_value, target in test_cases:
        out = text_seg_loss(preds, target, ignore_value, (5, 6, 10))
        out = jax.tree_util.tree_map(jax.block_until_ready, out)
        ref = _reference(preds, target, ignore_value, (5, 6, 10))
        for k in ("l1_loss", "pos_loss", "neg_loss"):
            assert jnp.allclose(out[k], ref[k], rtol=1e-5, atol=1e-5), (
                ignore_value, k, out[k], ref[k])

    print("KERNEL_OK")
</pallas_src>

<mosaic_0001>
module attributes {stable_mosaic.version = 11 : i64} {
  func.func @_seg_loss_kernel(%arg0: i32, %arg1: memref<3xi32, #tpu.memory_space<smem>>, %arg2: memref<64x128xf32, #tpu.memory_space<vmem>>, %arg3: memref<64x128xi8, #tpu.memory_space<vmem>>, %arg4: memref<3x4xf32, #tpu.memory_space<smem>>, %arg5: memref<12x8x128xf32, #tpu.memory_space<vmem>>) attributes {dimension_semantics = [#tpu.dimension_semantics<arbitrary>], iteration_bounds = array<i64: 3>, scalar_prefetch = 1 : i64, scratch_operands = 1 : i64, tpu.core_type = #tpu.core_type<tc>, window_params = [{transform_indices = @transform_0, window_bounds = array<i64: 64, 128>}, {transform_indices = @transform_1, window_bounds = array<i64: 64, 128>}, {transform_indices = @transform_2, window_bounds = array<i64: 3, 4>}]} {
    %c0_i32 = arith.constant 0 : i32
    %0 = arith.cmpi eq, %arg0, %c0_i32 : i32
    %1 = arith.extui %0 : i1 to i32
    %c0_i32_0 = arith.constant 0 : i32
    %2 = arith.cmpi ne, %1, %c0_i32_0 : i32
    scf.if %2 {
      %cst_31 = arith.constant 0.000000e+00 : f32
      %84 = vector.broadcast %cst_31 : f32 to vector<12x8x128xf32>
      %c0_32 = arith.constant 0 : index
      %c0_33 = arith.constant 0 : index
      %c0_34 = arith.constant 0 : index
      %85 = vector.load %arg5[%c0_32, %c0_33, %c0_34] : memref<12x8x128xf32, #tpu.memory_space<vmem>>, vector<12x8x128xf32>
      tpu.vector_store %arg5[%c0_32, %c0_33, %c0_34], %84 {strides = array<i32>} : memref<12x8x128xf32, #tpu.memory_space<vmem>>, vector<12x8x128xf32>,
    } else {
    }
    %3 = arith.index_cast %arg0 : i32 to index
    %4 = memref.load %arg1[%3] : memref<3xi32, #tpu.memory_space<smem>>
    %cst = arith.constant 0.000000e+00 : f32
    %5 = vector.broadcast %cst : f32 to vector<8x128xf32>
    %c0_i32_1 = arith.constant 0 : i32
    %c64_i32 = arith.constant 64 : i32
    %6 = arith.muli %c0_i32_1, %c64_i32 : i32
    %7 = tpu.assume_multiple %6, 64 : i32
    %8 = arith.index_cast %7 : i32 to index
    %c0 = arith.constant 0 : index
    %9 = vector.load %arg2[%8, %c0] : memref<64x128xf32, #tpu.memory_space<vmem>>, vector<64x128xf32>
    %10 = arith.index_cast %7 : i32 to index
    %c0_2 = arith.constant 0 : index
    %11 = vector.load %arg3[%10, %c0_2] : memref<64x128xi8, #tpu.memory_space<vmem>>, vector<64x128xi8>
    %12 = arith.sitofp %11 : vector<64x128xi8> to vector<64x128xf32>
    %cst_3 = arith.constant 1.000000e+00 : f32
    %13 = vector.broadcast %cst_3 : f32 to vector<64x128xf32>
    %14 = arith.cmpf oeq, %12, %13 : vector<64x128xf32>
    %15 = arith.extui %14 : vector<64x128xi1> to vector<64x128xi32>
    %16 = arith.sitofp %15 : vector<64x128xi32> to vector<64x128xf32>
    %cst_4 = arith.constant 0.000000e+00 : f32
    %17 = vector.broadcast %cst_4 : f32 to vector<64x128xf32>
    %18 = arith.cmpf oeq, %12, %17 : vector<64x128xf32>
    %19 = arith.extui %18 : vector<64x128xi1> to vector<64x128xi32>
    %20 = arith.sitofp %19 : vector<64x128xi32> to vector<64x128xf32>
    %21 = arith.subf %9, %16 : vector<64x128xf32>
    %22 = math.absf %21 : vector<64x128xf32>
    %cst_5 = arith.constant 1.000000e+00 : f32
    %23 = vector.broadcast %cst_5 : f32 to vector<64x128xf32>
    %24 = arith.cmpf olt, %22, %23 : vector<64x128xf32>
    %cst_6 = arith.constant 5.000000e-01 : f32
    %25 = vector.broadcast %cst_6 : f32 to vector<64x128xf32>
    %26 = arith.mulf %25, %21 : vector<64x128xf32>
    %27 = arith.mulf %26, %21 : vector<64x128xf32>
    %cst_7 = arith.constant 5.000000e-01 : f32
    %28 = vector.broadcast %cst_7 : f32 to vector<64x128xf32>
    %29 = arith.subf %22, %28 : vector<64x128xf32>
    %30 = arith.select %24, %27, %29 : vector<64x128xi1>, vector<64x128xf32>
    %31 = arith.mulf %30, %16 : vector<64x128xf32>
    %32 = vector.shape_cast %31 : vector<64x128xf32> to vector<8x8x128xf32>
    %cst_8 = arith.constant dense<0.000000e+00> : vector<8x128xf32>
    %33 = vector.multi_reduction <add>, %32, %cst_8 [0] : vector<8x8x128xf32> to vector<8x128xf32>
    %34 = arith.addf %5, %33 : vector<8x128xf32>
    %35 = vector.shape_cast %16 : vector<64x128xf32> to vector<8x8x128xf32>
    %cst_9 = arith.constant dense<0.000000e+00> : vector<8x128xf32>
    %36 = vector.multi_reduction <add>, %35, %cst_9 [0] : vector<8x8x128xf32> to vector<8x128xf32>
    %37 = arith.addf %5, %36 : vector<8x128xf32>
    %38 = arith.mulf %30, %20 : vector<64x128xf32>
    %39 = vector.shape_cast %38 : vector<64x128xf32> to vector<8x8x128xf32>
    %cst_10 = arith.constant dense<0.000000e+00> : vector<8x128xf32>
    %40 = vector.multi_reduction <add>, %39, %cst_10 [0] : vector<8x8x128xf32> to vector<8x128xf32>
    %41 = arith.addf %5, %40 : vector<8x128xf32>
    %42 = vector.shape_cast %20 : vector<64x128xf32> to vector<8x8x128xf32>
    %cst_11 = arith.constant dense<0.000000e+00> : vector<8x128xf32>
    %43 = vector.multi_reduction <add>, %42, %cst_11 [0] : vector<8x8x128xf32> to vector<8x128xf32>
    %44 = arith.addf %5, %43 : vector<8x128xf32>
    %c1_i32 = arith.constant 1 : i32
    %c4_i32 = arith.constant 4 : i32
    %45 = arith.muli %4, %c4_i32 : i32
    %46 = arith.index_cast %45 : i32 to index
    %c0_12 = arith.constant 0 : index
    %c0_13 = arith.constant 0 : index
    %47 = vector.load %arg5[%46, %c0_12, %c0_13] : memref<12x8x128xf32, #tpu.memory_space<vmem>>, vector<1x8x128xf32>
    %48 = vector.shape_cast %47 : vector<1x8x128xf32> to vector<8x128xf32>
    %49 = arith.addf %48, %34 : vector<8x128xf32>
    %50 = arith.index_cast %45 : i32 to index
    %c0_14 = arith.constant 0 : index
    %c0_15 = arith.constant 0 : index
    %51 = vector.load %arg5[%50, %c0_14, %c0_15] : memref<12x8x128xf32, #tpu.memory_space<vmem>>, vector<1x8x128xf32>
    %52 = vector.shape_cast %51 : vector<1x8x128xf32> to vector<8x128xf32>
    %53 = vector.shape_cast %49 : vector<8x128xf32> to vector<1x8x128xf32>
    tpu.vector_store %arg5[%50, %c0_14, %c0_15], %53 {strides = array<i32>} : memref<12x8x128xf32, #tpu.memory_space<vmem>>, vector<1x8x128xf32>,
    %c1_i32_16 = arith.constant 1 : i32
    %54 = arith.addi %45, %c1_i32_16 : i32
    %55 = arith.index_cast %54 : i32 to index
    %c0_17 = arith.constant 0 : index
    %c0_18 = arith.constant 0 : index
    %56 = vector.load %arg5[%55, %c0_17, %c0_18] : memref<12x8x128xf32, #tpu.memory_space<vmem>>, vector<1x8x128xf32>
    %57 = vector.shape_cast %56 : vector<1x8x128xf32> to vector<8x128xf32>
    %58 = arith.addf %57, %37 : vector<8x128xf32>
    %59 = arith.index_cast %54 : i32 to index
    %c0_19 = arith.constant 0 : index
    %c0_20 = arith.constant 0 : index
    %60 = vector.load %arg5[%59, %c0_19, %c0_20] : memref<12x8x128xf32, #tpu.memory_space<vmem>>, vector<1x8x128xf32>
    %61 = vector.shape_cast %60 : vector<1x8x128xf32> to vector<8x128xf32>
    %62 = vector.shape_cast %58 : vector<8x128xf32> to vector<1x8x128xf32>
    tpu.vector_store %arg5[%59, %c0_19, %c0_20], %62 {strides = array<i32>} : memref<12x8x128xf32, #tpu.memory_space<vmem>>, vector<1x8x128xf32>,
    %c2_i32 = arith.constant 2 : i32
    %63 = arith.addi %45, %c2_i32 : i32
    %64 = arith.index_cast %63 : i32 to index
    %c0_21 = arith.constant 0 : index
    %c0_22 = arith.constant 0 : index
    %65 = vector.load %arg5[%64, %c0_21, %c0_22] : memref<12x8x128xf32, #tpu.memory_space<vmem>>, vector<1x8x128xf32>
    %66 = vector.shape_cast %65 : vector<1x8x128xf32> to vector<8x128xf32>
    %67 = arith.addf %66, %41 : vector<8x128xf32>
    %68 = arith.index_cast %63 : i32 to index
    %c0_23 = arith.constant 0 : index
    %c0_24 = arith.constant 0 : index
    %69 = vector.load %arg5[%68, %c0_23, %c0_24] : memref<12x8x128xf32, #tpu.memory_space<vmem>>, vector<1x8x128xf32>
    %70 = vector.shape_cast %69 : vector<1x8x128xf32> to vector<8x128xf32>
    %71 = vector.shape_cast %67 : vector<8x128xf32> to vector<1x8x128xf32>
    tpu.vector_store %arg5[%68, %c0_23, %c0_24], %71 {strides = array<i32>} : memref<12x8x128xf32, #tpu.memory_space<vmem>>, vector<1x8x128xf32>,
    %c3_i32 = arith.constant 3 : i32
    %72 = arith.addi %45, %c3_i32 : i32
    %73 = arith.index_cast %72 : i32 to index
    %c0_25 = arith.constant 0 : index
    %c0_26 = arith.constant 0 : index
    %74 = vector.load %arg5[%73, %c0_25, %c0_26] : memref<12x8x128xf32, #tpu.memory_space<vmem>>, vector<1x8x128xf32>
    %75 = vector.shape_cast %74 : vector<1x8x128xf32> to vector<8x128xf32>
    %76 = arith.addf %75, %44 : vector<8x128xf32>
    %77 = arith.index_cast %72 : i32 to index
    %c0_27 = arith.constant 0 : index
    %c0_28 = arith.constant 0 : index
    %78 = vector.load %arg5[%77, %c0_27, %c0_28] : memref<12x8x128xf32, #tpu.memory_space<vmem>>, vector<1x8x128xf32>
    %79 = vector.shape_cast %78 : vector<1x8x128xf32> to vector<8x128xf32>
    %80 = vector.shape_cast %76 : vector<8x128xf32> to vector<1x8x128xf32>
    tpu.vector_store %arg5[%77, %c0_27, %c0_28], %80 {strides = array<i32>} : memref<12x8x128xf32, #tpu.memory_space<vmem>>, vector<1x8x128xf32>,
    %c2_i32_29 = arith.constant 2 : i32
    %81 = arith.cmpi eq, %arg0, %c2_i32_29 : i32
    %82 = arith.extui %81 : i1 to i32
    %c0_i32_30 = arith.constant 0 : i32
    %83 = arith.cmpi ne, %82, %c0_i32_30 : i32
    scf.if %83 {
      %c0_31 = arith.constant 0 : index
      %c0_32 = arith.constant 0 : index
      %c0_33 = arith.constant 0 : index
      %84 = vector.load %arg5[%c0_31, %c0_32, %c0_33] : memref<12x8x128xf32, #tpu.memory_space<vmem>>, vector<1x8x128xf32>
      %85 = vector.shape_cast %84 : vector<1x8x128xf32> to vector<8x128xf32>
      %86 = vector.shape_cast %85 : vector<8x128xf32> to vector<1x8x128xf32>
      %cst_34 = arith.constant dense<0.000000e+00> : vector<1xf32>
      %87 = vector.multi_reduction <add>, %86, %cst_34 [1, 2] : vector<1x8x128xf32> to vector<1xf32>
      %88 = vector.shape_cast %87 : vector<1xf32> to vector<1x1x1xf32>
      %89 = vector.extract %88[0, 0, 0] : f32 from vector<1x1x1xf32>
      %c0_35 = arith.constant 0 : index
      %c0_36 = arith.constant 0 : index
      %90 = memref.load %arg4[%c0_35, %c0_36] : memref<3x4xf32, #tpu.memory_space<smem>>
      memref.store %89, %arg4[%c0_35, %c0_36] : memref<3x4xf32, #tpu.memory_space<smem>>
      %c1 = arith.constant 1 : index
      %c0_37 = arith.constant 0 : index
      %c0_38 = arith.constant 0 : index
      %91 = vector.load %arg5[%c1, %c0_37, %c0_38] : memref<12x8x128xf32, #tpu.memory_space<vmem>>, vector<1x8x128xf32>
      %92 = vector.shape_cast %91 : vector<1x8x128xf32> to vector<8x128xf32>
      %93 = vector.shape_cast %92 : vector<8x128xf32> to vector<1x8x128xf32>
      %cst_39 = arith.constant dense<0.000000e+00> : vector<1xf32>
      %94 = vector.multi_reduction <add>, %93, %cst_39 [1, 2] : vector<1x8x128xf32> to vector<1xf32>
      %95 = vector.shape_cast %94 : vector<1xf32> to vector<1x1x1xf32>
      %96 = vector.extract %95[0, 0, 0] : f32 from vector<1x1x1xf32>
      %c0_40 = arith.constant 0 : index
      %c1_41 = arith.constant 1 : index
      %97 = memref.load %arg4[%c0_40, %c1_41] : memref<3x4xf32, #tpu.memory_space<smem>>
      memref.store %96, %arg4[%c0_40, %c1_41] : memref<3x4xf32, #tpu.memory_space<smem>>
      %c2 = arith.constant 2 : index
      %c0_42 = arith.constant 0 : index
      %c0_43 = arith.constant 0 : index
      %98 = vector.load %arg5[%c2, %c0_42, %c0_43] : memref<12x8x128xf32, #tpu.memory_space<vmem>>, vector<1x8x128xf32>
      %99 = vector.shape_cast %98 : vector<1x8x128xf32> to vector<8x128xf32>
      %100 = vector.shape_cast %99 : vector<8x128xf32> to vector<1x8x128xf32>
      %cst_44 = arith.constant dense<0.000000e+00> : vector<1xf32>
      %101 = vector.multi_reduction <add>, %100, %cst_44 [1, 2] : vector<1x8x128xf32> to vector<1xf32>
      %102 = vector.shape_cast %101 : vector<1xf32> to vector<1x1x1xf32>
      %103 = vector.extract %102[0, 0, 0] : f32 from vector<1x1x1xf32>
      %c0_45 = arith.constant 0 : index
      %c2_46 = arith.constant 2 : index
      %104 = memref.load %arg4[%c0_45, %c2_46] : memref<3x4xf32, #tpu.memory_space<smem>>
      memref.store %103, %arg4[%c0_45, %c2_46] : memref<3x4xf32, #tpu.memory_space<smem>>
      %c3 = arith.constant 3 : index
      %c0_47 = arith.constant 0 : index
      %c0_48 = arith.constant 0 : index
      %105 = vector.load %arg5[%c3, %c0_47, %c0_48] : memref<12x8x128xf32, #tpu.memory_space<vmem>>, vector<1x8x128xf32>
      %106 = vector.shape_cast %105 : vector<1x8x128xf32> to vector<8x128xf32>
      %107 = vector.shape_cast %106 : vector<8x128xf32> to vector<1x8x128xf32>
      %cst_49 = arith.constant dense<0.000000e+00> : vector<1xf32>
      %108 = vector.multi_reduction <add>, %107, %cst_49 [1, 2] : vector<1x8x128xf32> to vector<1xf32>
      %109 = vector.shape_cast %108 : vector<1xf32> to vector<1x1x1xf32>
      %110 = vector.extract %109[0, 0, 0] : f32 from vector<1x1x1xf32>
      %c0_50 = arith.constant 0 : index
      %c3_51 = arith.constant 3 : index
      %111 = memref.load %arg4[%c0_50, %c3_51] : memref<3x4xf32, #tpu.memory_space<smem>>
      memref.store %110, %arg4[%c0_50, %c3_51] : memref<3x4xf32, #tpu.memory_space<smem>>
      %c4 = arith.constant 4 : index
      %c0_52 = arith.constant 0 : index
      %c0_53 = arith.constant 0 : index
      %112 = vector.load %arg5[%c4, %c0_52, %c0_53] : memref<12x8x128xf32, #tpu.memory_space<vmem>>, vector<1x8x128xf32>
      %113 = vector.shape_cast %112 : vector<1x8x128xf32> to vector<8x128xf32>
      %114 = vector.shape_cast %113 : vector<8x128xf32> to vector<1x8x128xf32>
      %cst_54 = arith.constant dense<0.000000e+00> : vector<1xf32>
      %115 = vector.multi_reduction <add>, %114, %cst_54 [1, 2] : vector<1x8x128xf32> to vector<1xf32>
      %116 = vector.shape_cast %115 : vector<1xf32> to vector<1x1x1xf32>
      %117 = vector.extract %116[0, 0, 0] : f32 from vector<1x1x1xf32>
      %c1_55 = arith.constant 1 : index
      %c0_56 = arith.constant 0 : index
      %118 = memref.load %arg4[%c1_55, %c0_56] : memref<3x4xf32, #tpu.memory_space<smem>>
      memref.store %117, %arg4[%c1_55, %c0_56] : memref<3x4xf32, #tpu.memory_space<smem>>
      %c5 = arith.constant 5 : index
      %c0_57 = arith.constant 0 : index
      %c0_58 = arith.constant 0 : index
      %119 = vector.load %arg5[%c5, %c0_57, %c0_58] : memref<12x8x128xf32, #tpu.memory_space<vmem>>, vector<1x8x128xf32>
      %120 = vector.shape_cast %119 : vector<1x8x128xf32> to vector<8x128xf32>
      %121 = vector.shape_cast %120 : vector<8x128xf32> to vector<1x8x128xf32>
      %cst_59 = arith.constant dense<0.000000e+00> : vector<1xf32>
      %122 = vector.multi_reduction <add>, %121, %cst_59 [1, 2] : vector<1x8x128xf32> to vector<1xf32>
      %123 = vector.shape_cast %122 : vector<1xf32> to vector<1x1x1xf32>
      %124 = vector.extract %123[0, 0, 0] : f32 from vector<1x1x1xf32>
      %c1_60 = arith.constant 1 : index
      %c1_61 = arith.constant 1 : index
      %125 = memref.load %arg4[%c1_60, %c1_61] : memref<3x4xf32, #tpu.memory_space<smem>>
      memref.store %124, %arg4[%c1_60, %c1_61] : memref<3x4xf32, #tpu.memory_space<smem>>
      %c6 = arith.constant 6 : index
      %c0_62 = arith.constant 0 : index
      %c0_63 = arith.constant 0 : index
      %126 = vector.load %arg5[%c6, %c0_62, %c0_63] : memref<12x8x128xf32, #tpu.memory_space<vmem>>, vector<1x8x128xf32>
      %127 = vector.shape_cast %126 : vector<1x8x128xf32> to vector<8x128xf32>
      %128 = vector.shape_cast %127 : vector<8x128xf32> to vector<1x8x128xf32>
      %cst_64 = arith.constant dense<0.000000e+00> : vector<1xf32>
      %129 = vector.multi_reduction <add>, %128, %cst_64 [1, 2] : vector<1x8x128xf32> to vector<1xf32>
      %130 = vector.shape_cast %129 : vector<1xf32> to vector<1x1x1xf32>
      %131 = vector.extract %130[0, 0, 0] : f32 from vector<1x1x1xf32>
      %c1_65 = arith.constant 1 : index
      %c2_66 = arith.constant 2 : index
      %132 = memref.load %arg4[%c1_65, %c2_66] : memref<3x4xf32, #tpu.memory_space<smem>>
      memref.store %131, %arg4[%c1_65, %c2_66] : memref<3x4xf32, #tpu.memory_space<smem>>
      %c7 = arith.constant 7 : index
      %c0_67 = arith.constant 0 : index
      %c0_68 = arith.constant 0 : index
      %133 = vector.load %arg5[%c7, %c0_67, %c0_68] : memref<12x8x128xf32, #tpu.memory_space<vmem>>, vector<1x8x128xf32>
      %134 = vector.shape_cast %133 : vector<1x8x128xf32> to vector<8x128xf32>
      %135 = vector.shape_cast %134 : vector<8x128xf32> to vector<1x8x128xf32>
      %cst_69 = arith.constant dense<0.000000e+00> : vector<1xf32>
      %136 = vector.multi_reduction <add>, %135, %cst_69 [1, 2] : vector<1x8x128xf32> to vector<1xf32>
      %137 = vector.shape_cast %136 : vector<1xf32> to vector<1x1x1xf32>
      %138 = vector.extract %137[0, 0, 0] : f32 from vector<1x1x1xf32>
      %c1_70 = arith.constant 1 : index
      %c3_71 = arith.constant 3 : index
      %139 = memref.load %arg4[%c1_70, %c3_71] : memref<3x4xf32, #tpu.memory_space<smem>>
      memref.store %138, %arg4[%c1_70, %c3_71] : memref<3x4xf32, #tpu.memory_space<smem>>
      %c8 = arith.constant 8 : index
      %c0_72 = arith.constant 0 : index
      %c0_73 = arith.constant 0 : index
      %140 = vector.load %arg5[%c8, %c0_72, %c0_73] : memref<12x8x128xf32, #tpu.memory_space<vmem>>, vector<1x8x128xf32>
      %141 = vector.shape_cast %140 : vector<1x8x128xf32> to vector<8x128xf32>
      %142 = vector.shape_cast %141 : vector<8x128xf32> to vector<1x8x128xf32>
      %cst_74 = arith.constant dense<0.000000e+00> : vector<1xf32>
      %143 = vector.multi_reduction <add>, %142, %cst_74 [1, 2] : vector<1x8x128xf32> to vector<1xf32>
      %144 = vector.shape_cast %143 : vector<1xf32> to vector<1x1x1xf32>
      %145 = vector.extract %144[0, 0, 0] : f32 from vector<1x1x1xf32>
      %c2_75 = arith.constant 2 : index
      %c0_76 = arith.constant 0 : index
      %146 = memref.load %arg4[%c2_75, %c0_76] : memref<3x4xf32, #tpu.memory_space<smem>>
      memref.store %145, %arg4[%c2_75, %c0_76] : memref<3x4xf32, #tpu.memory_space<smem>>
      %c9 = arith.constant 9 : index
      %c0_77 = arith.constant 0 : index
      %c0_78 = arith.constant 0 : index
      %147 = vector.load %arg5[%c9, %c0_77, %c0_78] : memref<12x8x128xf32, #tpu.memory_space<vmem>>, vector<1x8x128xf32>
      %148 = vector.shape_cast %147 : vector<1x8x128xf32> to vector<8x128xf32>
      %149 = vector.shape_cast %148 : vector<8x128xf32> to vector<1x8x128xf32>
      %cst_79 = arith.constant dense<0.000000e+00> : vector<1xf32>
      %150 = vector.multi_reduction <add>, %149, %cst_79 [1, 2] : vector<1x8x128xf32> to vector<1xf32>
      %151 = vector.shape_cast %150 : vector<1xf32> to vector<1x1x1xf32>
      %152 = vector.extract %151[0, 0, 0] : f32 from vector<1x1x1xf32>
      %c2_80 = arith.constant 2 : index
      %c1_81 = arith.constant 1 : index
      %153 = memref.load %arg4[%c2_80, %c1_81] : memref<3x4xf32, #tpu.memory_space<smem>>
      memref.store %152, %arg4[%c2_80, %c1_81] : memref<3x4xf32, #tpu.memory_space<smem>>
      %c10 = arith.constant 10 : index
      %c0_82 = arith.constant 0 : index
      %c0_83 = arith.constant 0 : index
      %154 = vector.load %arg5[%c10, %c0_82, %c0_83] : memref<12x8x128xf32, #tpu.memory_space<vmem>>, vector<1x8x128xf32>
      %155 = vector.shape_cast %154 : vector<1x8x128xf32> to vector<8x128xf32>
      %156 = vector.shape_cast %155 : vector<8x128xf32> to vector<1x8x128xf32>
      %cst_84 = arith.constant dense<0.000000e+00> : vector<1xf32>
      %157 = vector.multi_reduction <add>, %156, %cst_84 [1, 2] : vector<1x8x128xf32> to vector<1xf32>
      %158 = vector.shape_cast %157 : vector<1xf32> to vector<1x1x1xf32>
      %159 = vector.extract %158[0, 0, 0] : f32 from vector<1x1x1xf32>
      %c2_85 = arith.constant 2 : index
      %c2_86 = arith.constant 2 : index
      %160 = memref.load %arg4[%c2_85, %c2_86] : memref<3x4xf32, #tpu.memory_space<smem>>
      memref.store %159, %arg4[%c2_85, %c2_86] : memref<3x4xf32, #tpu.memory_space<smem>>
      %c11 = arith.constant 11 : index
      %c0_87 = arith.constant 0 : index
      %c0_88 = arith.constant 0 : index
      %161 = vector.load %arg5[%c11, %c0_87, %c0_88] : memref<12x8x128xf32, #tpu.memory_space<vmem>>, vector<1x8x128xf32>
      %162 = vector.shape_cast %161 : vector<1x8x128xf32> to vector<8x128xf32>
      %163 = vector.shape_cast %162 : vector<8x128xf32> to vector<1x8x128xf32>
      %cst_89 = arith.constant dense<0.000000e+00> : vector<1xf32>
      %164 = vector.multi_reduction <add>, %163, %cst_89 [1, 2] : vector<1x8x128xf32> to vector<1xf32>
      %165 = vector.shape_cast %164 : vector<1xf32> to vector<1x1x1xf32>
      %166 = vector.extract %165[0, 0, 0] : f32 from vector<1x1x1xf32>
      %c2_90 = arith.constant 2 : index
      %c3_91 = arith.constant 3 : index
      %167 = memref.load %arg4[%c2_90, %c3_91] : memref<3x4xf32, #tpu.memory_space<smem>>
      memref.store %166, %arg4[%c2_90, %c3_91] : memref<3x4xf32, #tpu.memory_space<smem>>
    } else {
    }
    return
  }
  func.func @transform_0(%arg0: i32, %arg1: memref<3xi32, #tpu.memory_space<smem>>) -> (i32, i32) {
    %c0_i32 = arith.constant 0 : i32
    %c0_i32_0 = arith.constant 0 : i32
    return %arg0, %c0_i32 : i32, i32
  }
  func.func @transform_1(%arg0: i32, %arg1: memref<3xi32, #tpu.memory_space<smem>>) -> (i32, i32) {
    %c0_i32 = arith.constant 0 : i32
    %c0_i32_0 = arith.constant 0 : i32
    return %arg0, %c0_i32 : i32, i32
  }
  func.func @transform_2(%arg0: i32, %arg1: memref<3xi32, #tpu.memory_space<smem>>) -> (i32, i32) {
    %c0_i32 = arith.constant 0 : i32
    %c0_i32_0 = arith.constant 0 : i32
    %c0_i32_1 = arith.constant 0 : i32
    return %c0_i32, %c0_i32_0 : i32, i32
  }
}

</mosaic_0001>

<llo_original>
// kernel: text_seg_loss.1
$region0: #{text_seg_loss.1}
  #allocation0 [shape = 'u32[]', space=smem, size = 0x4, offset = 0x4, fixed_abs, tag = 'smem constant byte address 0x4 - core index']
  #allocation1 [shape = 'u32[144,128]{1,0:T(1,128)}', space=vmem, size = 0x12000, scoped, tag = 'internal scratch']
  #allocation2 [shape = 'f32[12,8,128]{2,1,0:T(8,128)}', space=vmem, size = 0xc000, scoped, tag = 'scratch operand']
  #allocation3 [shape = 's32[1]{0}', space=sflag, size = 0x4, scoped, tag = 'scoped memory for text_seg_loss.1']
  #allocation4 [shape = 'u8[512]{0}', space=smem, size = 0x200, scoped, tag = 'prefetched SMEM operand 0']
  %s0 = inlined_call_operand.vmem [shape: s32[3], index: 0, kind: input, shape index: {}]
  %s1 = inlined_call_operand.vmem [shape: f32[192,128], index: 1, kind: input, shape index: {}]
  %s2 = inlined_call_operand.vmem [shape: s8[192,128], index: 2, kind: input, shape index: {}]
  %s3 = inlined_call_operand.vmem [shape: f32[3,4], index: 3, kind: output, shape index: {}]
  %s4 = sld [smem:[#allocation0]]
  $region49: #{text_seg_loss.1} parent=0
    _
  %s6 = ssub.s32 1, %s4
  %s7 = scalar_select 0, %s6, %s4
  %s8 = sshll.u32 %s0, 4
  %s9 = int_to_ptr.vmem [resolvable:$true] %s8
  %11 = dma.vmem_to_smem %s9, 16, [#allocation4], [#allocation3]
  %12 = dma.done [#allocation3], 16
  %13 = sfence
  $region1: #{text_seg_loss.1} parent=0
    #allocation5 [shape = 'u8[2048]{0}', space=smem, size = 0x800, scoped, tag = 'output window, operand 0, single buffered']
    #allocation6 [shape = 's32[2]{0}', space=sflag, size = 0x8, scoped, tag = 'scoped memory for text_seg_loss.1']
    %14 = vsyncpa [#allocation6], 0
    loop: start=0, step=1, limit=5
    $region2: #{text_seg_loss.1} parent=1 // loop_pre_header
      _
    $region3: #{text_seg_loss.1} parent=1 // loop_header
      %s16 = sphi 0, %s20
      %p17 = scmp.ge.s32.totalorder %s16, 5
      %s26 = sphi 0, %s28
      %s29 = sphi 0, %s26
      %s30 = sphi 0, %s29
      %s46 = sphi 0, %s30
      %s52 = sphi 0, %s54
      %s55 = sphi 0, %s52
      %s56 = sphi 0, %s55
      %s72 = sphi 0, %s56
      %s76 = sphi 0, %s76
      %s78 = sphi 0, %s76
      %s79 = sphi 0, %s78
      %s93 = sphi 0, %s79
    $region4: #{text_seg_loss.1} parent=1 // loop_header_branch
      %19 = sbr.rel (%p17) target = $region8
    $region5: #{text_seg_loss.1} parent=1 // loop_body
      %s21 = ssub.s32 %s16, 1
      %s22 = ssub.s32 %s16, 2
      %s23 = sadd.s32 %s16, 1
      %s24 = ssub.s32 %s16, %s23
      %p25 = scmp.eq.s32.totalorder %s24, 0
      %s27 = sadd.s32 %s26, 1
      %s28 = scalar_select %p25, %s26, %s27
      %p31 = pneg %p25
      %p32 = scmp.eq.s32.totalorder %s16, 2
      %p33 = por %p31, %p32
      %p34 = scmp.ne.s32.totalorder %s26, %s29
      %p35 = scmp.eq.s32.totalorder %s16, 0
      %p36 = por %p34, %p35
      %p37 = scmp.ne.s32.totalorder %s26, %s29
      %p38 = scmp.eq.s32.totalorder %s21, 2
      %p39 = por %p37, %p38
      %p40 = scmp.ne.s32.totalorder %s29, %s30
      %p41 = scmp.eq.s32.totalorder %s21, 0
      %p42 = por %p40, %p41
      %p43 = scmp.ne.s32.totalorder %s29, %s30
      %p44 = scmp.eq.s32.totalorder %s22, 2
      %p45 = por %p43, %p44
      %p47 = scmp.ne.s32.totalorder %s30, %s46
      %p48 = scmp.eq.s32.totalorder %s22, 0
      %p49 = por %p47, %p48
      %s50 = ssub.s32 %s16, %s23
      %p51 = scmp.eq.s32.totalorder %s50, 0
      %s53 = sadd.s32 %s52, 1
      %s54 = scalar_select %p51, %s52, %s53
      %p57 = pneg %p51
      %p58 = scmp.eq.s32.totalorder %s16, 2
      %p59 = por %p57, %p58
      %p60 = scmp.ne.s32.totalorder %s52, %s55
      %p61 = scmp.eq.s32.totalorder %s16, 0
      %p62 = por %p60, %p61
      %p63 = scmp.ne.s32.totalorder %s52, %s55
      %p64 = scmp.eq.s32.totalorder %s21, 2
      %p65 = por %p63, %p64
      %p66 = scmp.ne.s32.totalorder %s55, %s56
      %p67 = scmp.eq.s32.totalorder %s21, 0
      %p68 = por %p66, %p67
      %p69 = scmp.ne.s32.totalorder %s55, %s56
      %p70 = scmp.eq.s32.totalorder %s22, 2
      %p71 = por %p69, %p70
      %p73 = scmp.ne.s32.totalorder %s56, %s72
      %p74 = scmp.eq.s32.totalorder %s22, 0
      %p75 = por %p73, %p74
      %s77 = sadd.s32 %s76, 1
      %p80 = scmp.eq.s32.totalorder %s16, 2
      %p81 = scmp.ne.s32.totalorder %s76, %s78
      %p82 = scmp.eq.s32.totalorder %s16, 0
      %p83 = por %p81, %p82
      %p84 = scmp.ne.s32.totalorder %s76, %s78
      %p85 = scmp.eq.s32.totalorder %s21, 2
      %p86 = por %p84, %p85
      %p87 = scmp.ne.s32.totalorder %s78, %s79
      %p88 = scmp.eq.s32.totalorder %s21, 0
      %p89 = por %p87, %p88
      %p90 = scmp.ne.s32.totalorder %s78, %s79
      %p91 = scmp.eq.s32.totalorder %s22, 2
      %p92 = por %p90, %p91
      %p94 = scmp.ne.s32.totalorder %s79, %s93
      %p95 = scmp.eq.s32.totalorder %s22, 0
      %p96 = por %p94, %p95
      %p97 = scmp.le.s32.totalorder 1, %s16
      %p98 = scmp.lt.s32.totalorder %s16, 4
      %p99 = pnand %p97, %p98
      %p100 = pneg %p99
      // Predicated region
      $region9: #{text_seg_loss.1} parent=5 // pred_check
        _
      $region10: #{text_seg_loss.1} parent=5 // pred_check_branch
        %102 = sbr.rel (%p99) target = $region12
      $region11: #{text_seg_loss.1} parent=5 // pred_region
        %s103 = ssub.s32 %s16, 1
      $region12: #{text_seg_loss.1} parent=5 // pred_fallthru
        _
      %p104 = scmp.lt.s32.totalorder %s16, 3
      // Predicated region
      $region13: #{text_seg_loss.1} parent=5 // pred_check
        %p105 = pneg %p104
      $region14: #{text_seg_loss.1} parent=5 // pred_check_branch
        %107 = sbr.rel (%p105) target = $region16
      $region15: #{text_seg_loss.1} parent=5 // pred_region
        // Predicated region
        $region17: #{text_seg_loss.1} parent=15 // pred_check
          %p108 = pneg %p36
        $region18: #{text_seg_loss.1} parent=15 // pred_check_branch
          %110 = sbr.rel (%p108) target = $region20
        $region19: #{text_seg_loss.1} parent=15 // pred_region
          %s111 = smul.u32 8, %s16
          %p112 = scmp.lt.s32.totalorder %s111, 23
          %s113 = scalar_select %p112, %s111, 23
          %s114 = smul.addr %s113, 8
          %s115 = scalar_lea.vmem %s1, %s114
          %s116 = smul.u32 8, %s16
        $region20: #{text_seg_loss.1} parent=15 // pred_fallthru
          _
        // Predicated region
        $region21: #{text_seg_loss.1} parent=15 // pred_check
          %p117 = pneg %p62
        $region22: #{text_seg_loss.1} parent=15 // pred_check_branch
          %119 = sbr.rel (%p117) target = $region24
        $region23: #{text_seg_loss.1} parent=15 // pred_region
          %s120 = smul.u32 2, %s16
          %p121 = scmp.lt.s32.totalorder %s120, 5
          %s122 = scalar_select %p121, %s120, 5
          %s123 = smul.addr %s122, 8
          %s124 = scalar_lea.vmem %s2, %s123
          %s125 = smul.u32 2, %s16
        $region24: #{text_seg_loss.1} parent=15 // pred_fallthru
          _
      $region16: #{text_seg_loss.1} parent=5 // pred_fallthru
        _
      %p126 = scmp.le.s32.totalorder 1, %s16
      %p127 = scmp.lt.s32.totalorder %s16, 4
      %p128 = pnand %p126, %p127
      %p129 = pneg %p128
      // Predicated region
      $region25: #{text_seg_loss.1} parent=5 // pred_check
        _
      $region26: #{text_seg_loss.1} parent=5 // pred_check_branch
        %131 = sbr.rel (%p128) target = $region28
      $region27: #{text_seg_loss.1} parent=5 // pred_region
        %s132 = ssub.s32 %s16, 1
        %s133 = smul.u32 8, %s21
        %p134 = scmp.lt.s32.totalorder %s133, 23
        %s135 = scalar_select %p134, %s133, 23
        %s136 = smul.addr %s135, 8
        %s137 = scalar_lea.vmem %s1, %s136
        %p138 = pneg %p42
        %p139 = pneg %p39
        %s140 = smul.u32 2, %s21
        %p141 = scmp.lt.s32.totalorder %s140, 5
        %s142 = scalar_select %p141, %s140, 5
        %s143 = smul.addr %s142, 8
        %s144 = scalar_lea.vmem %s2, %s143
        %p145 = pneg %p68
        %p146 = pneg %p65
        %p147 = pneg %p89
        %p148 = pneg %p86
        %s149 = smul.u32 8, %s21
        %p150 = scmp.lt.s32.totalorder %s149, 23
        %s151 = scalar_select %p150, %s149, 23
        %s152 = smul.addr %s151, 8
        %s153 = scalar_lea.vmem %s1, %s152
        %s154 = smul.u32 8, %s21
        %s155 = smul.u32 2, %s21
        %p156 = scmp.lt.s32.totalorder %s155, 5
        %s157 = scalar_select %p156, %s155, 5
        %s158 = smul.addr %s157, 8
        %s159 = scalar_lea.vmem %s2, %s158
        %s160 = smul.u32 2, %s21
        %p161 = scmp.eq.s32.totalorder %s21, 0
        // Predicated region
        $region29: #{text_seg_loss.1} parent=27 // pred_check
          %p162 = pneg %p161
        $region30: #{text_seg_loss.1} parent=27 // pred_check_branch
          %164 = sbr.rel (%p162) target = $region32
        $region31: #{text_seg_loss.1} parent=27 // pred_region
          %165 = vst [vmem:[#allocation2] sm:$0xff] 0.0
          %166 = vst [vmem:[#allocation2 + $0x8] sm:$0xff] 0.0
          %167 = vst [vmem:[#allocation2 + $0x10] sm:$0xff] 0.0
          %168 = vst [vmem:[#allocation2 + $0x18] sm:$0xff] 0.0
          %169 = vst [vmem:[#allocation2 + $0x20] sm:$0xff] 0.0
          %170 = vst [vmem:[#allocation2 + $0x28] sm:$0xff] 0.0
          %171 = vst [vmem:[#allocation2 + $0x30] sm:$0xff] 0.0
          %172 = vst [vmem:[#allocation2 + $0x38] sm:$0xff] 0.0
          %173 = vst [vmem:[#allocation2 + $0x40] sm:$0xff] 0.0
          %174 = vst [vmem:[#allocation2 + $0x48] sm:$0xff] 0.0
          %175 = vst [vmem:[#allocation2 + $0x50] sm:$0xff] 0.0
          %176 = vst [vmem:[#allocation2 + $0x58] sm:$0xff] 0.0
        $region32: #{text_seg_loss.1} parent=27 // pred_fallthru
          _
        %s177 = sld [smem:[#allocation4 + %s21]]
        %v178 = vld [vmem:[%s153] sm:$0xff]
        %v179 = vld [vmem:[%s153 + $0x8] sm:$0xff]
        %v180 = vld [vmem:[%s153 + $0x10] sm:$0xff]
        %v181 = vld [vmem:[%s153 + $0x18] sm:$0xff]
        %v182 = vld [vmem:[%s153 + $0x20] sm:$0xff]
        %v183 = vld [vmem:[%s153 + $0x28] sm:$0xff]
        %v184 = vld [vmem:[%s153 + $0x30] sm:$0xff]
        %v185 = vld [vmem:[%s153 + $0x38] sm:$0xff]
        %v186 = vld [vmem:[%s159] sm:$0xff]
        %v187 = vld [vmem:[%s159 + $0x8] sm:$0xff]
        %v188 = vunpack.c.0.s8 %v186
        %v189 = vunpack.c.1.s8 %v186
        %v190 = vunpack.c.2.s8 %v186
        %v191 = vunpack.c.3.s8 %v186
        %v192 = vunpack.c.0.s8 %v187
        %v193 = vunpack.c.1.s8 %v187
        %v194 = vunpack.c.2.s8 %v187
        %v195 = vunpack.c.3.s8 %v187
        %v196 = vcvt.s32.f32 %v188
        %v197 = vcvt.s32.f32 %v189
        %v198 = vcvt.s32.f32 %v190
        %v199 = vcvt.s32.f32 %v191
        %v200 = vcvt.s32.f32 %v192
        %v201 = vcvt.s32.f32 %v193
        %v202 = vcvt.s32.f32 %v194
        %v203 = vcvt.s32.f32 %v195
        %vm204 = vcmp.eq.f32.partialorder %v196, 1.0
        %vm205 = vcmp.eq.f32.partialorder %v197, 1.0
        %vm206 = vcmp.eq.f32.partialorder %v198, 1.0
        %vm207 = vcmp.eq.f32.partialorder %v199, 1.0
        %vm208 = vcmp.eq.f32.partialorder %v200, 1.0
        %vm209 = vcmp.eq.f32.partialorder %v201, 1.0
        %vm210 = vcmp.eq.f32.partialorder %v202, 1.0
        %vm211 = vcmp.eq.f32.partialorder %v203, 1.0
        %v212 = vsel %vm204, 1, 0
        %v213 = vsel %vm205, 1, 0
        %v214 = vsel %vm206, 1, 0
        %v215 = vsel %vm207, 1, 0
        %v216 = vsel %vm208, 1, 0
        %v217 = vsel %vm209, 1, 0
        %v218 = vsel %vm210, 1, 0
        %v219 = vsel %vm211, 1, 0
        %v220 = vcvt.s32.f32 %v212
        %v221 = vcvt.s32.f32 %v213
        %v222 = vcvt.s32.f32 %v214
        %v223 = vcvt.s32.f32 %v215
        %v224 = vcvt.s32.f32 %v216
        %v225 = vcvt.s32.f32 %v217
        %v226 = vcvt.s32.f32 %v218
        %v227 = vcvt.s32.f32 %v219
        %vm228 = vcmp.eq.f32.partialorder %v196, 0.0
        %vm229 = vcmp.eq.f32.partialorder %v197, 0.0
        %vm230 = vcmp.eq.f32.partialorder %v198, 0.0
        %vm231 = vcmp.eq.f32.partialorder %v199, 0.0
        %vm232 = vcmp.eq.f32.partialorder %v200, 0.0
        %vm233 = vcmp.eq.f32.partialorder %v201, 0.0
        %vm234 = vcmp.eq.f32.partialorder %v202, 0.0
        %vm235 = vcmp.eq.f32.partialorder %v203, 0.0
        %v236 = vsel %vm228, 1, 0
        %v237 = vsel %vm229, 1, 0
        %v238 = vsel %vm230, 1, 0
        %v239 = vsel %vm231, 1, 0
        %v240 = vsel %vm232, 1, 0
        %v241 = vsel %vm233, 1, 0
        %v242 = vsel %vm234, 1, 0
        %v243 = vsel %vm235, 1, 0
        %v244 = vcvt.s32.f32 %v236
        %v245 = vcvt.s32.f32 %v237
        %v246 = vcvt.s32.f32 %v238
        %v247 = vcvt.s32.f32 %v239
        %v248 = vcvt.s32.f32 %v240
        %v249 = vcvt.s32.f32 %v241
        %v250 = vcvt.s32.f32 %v242
        %v251 = vcvt.s32.f32 %v243
        %v252 = vsub.f32 %v178, %v220
        %v253 = vsub.f32 %v179, %v221
        %v254 = vsub.f32 %v180, %v222
        %v255 = vsub.f32 %v181, %v223
        %v256 = vsub.f32 %v182, %v224
        %v257 = vsub.f32 %v183, %v225
        %v258 = vsub.f32 %v184, %v226
        %v259 = vsub.f32 %v185, %v227
        %v260 = vand.u32 2147483647, %v252
        %v261 = vand.u32 2147483647, %v253
        %v262 = vand.u32 2147483647, %v254
        %v263 = vand.u32 2147483647, %v255
        %v264 = vand.u32 2147483647, %v256
        %v265 = vand.u32 2147483647, %v257
        %v266 = vand.u32 2147483647, %v258
        %v267 = vand.u32 2147483647, %v259
        %vm268 = vcmp.lt.f32.partialorder %v260, 1.0
        %vm269 = vcmp.lt.f32.partialorder %v261, 1.0
        %vm270 = vcmp.lt.f32.partialorder %v262, 1.0
        %vm271 = vcmp.lt.f32.partialorder %v263, 1.0
        %vm272 = vcmp.lt.f32.partialorder %v264, 1.0
        %vm273 = vcmp.lt.f32.partialorder %v265, 1.0
        %vm274 = vcmp.lt.f32.partialorder %v266, 1.0
        %vm275 = vcmp.lt.f32.partialorder %v267, 1.0
        %v276 = vmul.f32 %v252, 0.5
        %v277 = vmul.f32 %v253, 0.5
        %v278 = vmul.f32 %v254, 0.5
        %v279 = vmul.f32 %v255, 0.5
        %v280 = vmul.f32 %v256, 0.5
        %v281 = vmul.f32 %v257, 0.5
        %v282 = vmul.f32 %v258, 0.5
        %v283 = vmul.f32 %v259, 0.5
        %v284 = vmul.f32 %v276, %v252
        %v285 = vmul.f32 %v277, %v253
        %v286 = vmul.f32 %v278, %v254
        %v287 = vmul.f32 %v279, %v255
        %v288 = vmul.f32 %v280, %v256
        %v289 = vmul.f32 %v281, %v257
        %v290 = vmul.f32 %v282, %v258
        %v291 = vmul.f32 %v283, %v259
        %v292 = vsub.f32 %v260, 0.5
        %v293 = vsub.f32 %v261, 0.5
        %v294 = vsub.f32 %v262, 0.5
        %v295 = vsub.f32 %v263, 0.5
        %v296 = vsub.f32 %v264, 0.5
        %v297 = vsub.f32 %v265, 0.5
        %v298 = vsub.f32 %v266, 0.5
        %v299 = vsub.f32 %v267, 0.5
        %v300 = vsel %vm268, %v284, %v292
        %v301 = vsel %vm269, %v285, %v293
        %v302 = vsel %vm270, %v286, %v294
        %v303 = vsel %vm271, %v287, %v295
        %v304 = vsel %vm272, %v288, %v296
        %v305 = vsel %vm273, %v289, %v297
        %v306 = vsel %vm274, %v290, %v298
        %v307 = vsel %vm275, %v291, %v299
        %v308 = vmul.f32 %v300, %v220
        %v309 = vmul.f32 %v301, %v221
        %v310 = vmul.f32 %v302, %v222
        %v311 = vmul.f32 %v303, %v223
        %v312 = vmul.f32 %v304, %v224
        %v313 = vmul.f32 %v305, %v225
        %v314 = vmul.f32 %v306, %v226
        %v315 = vmul.f32 %v307, %v227
        %v316 = vadd.f32 %v308, %v309
        %v317 = vadd.f32 %v316, %v310
        %v318 = vadd.f32 %v317, %v311
        %v319 = vadd.f32 %v318, %v312
        %v320 = vadd.f32 %v319, %v313
        %v321 = vadd.f32 %v320, %v314
        %v322 = vadd.f32 %v321, %v315
        %v323 = vadd.f32 %v322, 0.0
        %v324 = vadd.f32 %v220, %v221
        %v325 = vadd.f32 %v324, %v222
        %v326 = vadd.f32 %v325, %v223
        %v327 = vadd.f32 %v326, %v224
        %v328 = vadd.f32 %v327, %v225
        %v329 = vadd.f32 %v328, %v226
        %v330 = vadd.f32 %v329, %v227
        %v331 = vadd.f32 %v330, 0.0
        %v332 = vmul.f32 %v300, %v244
        %v333 = vmul.f32 %v301, %v245
        %v334 = vmul.f32 %v302, %v246
        %v335 = vmul.f32 %v303, %v247
        %v336 = vmul.f32 %v304, %v248
        %v337 = vmul.f32 %v305, %v249
        %v338 = vmul.f32 %v306, %v250
        %v339 = vmul.f32 %v307, %v251
        %v340 = vadd.f32 %v332, %v333
        %v341 = vadd.f32 %v340, %v334
        %v342 = vadd.f32 %v341, %v335
        %v343 = vadd.f32 %v342, %v336
        %v344 = vadd.f32 %v343, %v337
        %v345 = vadd.f32 %v344, %v338
        %v346 = vadd.f32 %v345, %v339
        %v347 = vadd.f32 %v346, 0.0
        %v348 = vadd.f32 %v244, %v245
        %v349 = vadd.f32 %v348, %v246
        %v350 = vadd.f32 %v349, %v247
        %v351 = vadd.f32 %v350, %v248
        %v352 = vadd.f32 %v351, %v249
        %v353 = vadd.f32 %v352, %v250
        %v354 = vadd.f32 %v353, %v251
        %v355 = vadd.f32 %v354, 0.0
        %s356 = smul.u32 %s177, 4
        %s357 = smul.u32 %s356, 8
        %s358 = scalar_lea.vmem [#allocation2], %s357
        %v359 = vld [vmem:[%s358] sm:$0xff]
        %v360 = vadd.f32 %v359, %v323
        %361 = vst [vmem:[%s358] sm:$0xff] %v360
        %s362 = sadd.s32 %s356, 1
        %s363 = smul.u32 %s362, 8
        %s364 = scalar_lea.vmem [#allocation2], %s363
        %v365 = vld [vmem:[%s364] sm:$0xff]
        %v366 = vadd.f32 %v365, %v331
        %367 = vst [vmem:[%s364] sm:$0xff] %v366
        %s368 = sadd.s32 %s356, 2
        %s369 = smul.u32 %s368, 8
        %s370 = scalar_lea.vmem [#allocation2], %s369
        %v371 = vld [vmem:[%s370] sm:$0xff]
        %v372 = vadd.f32 %v371, %v347
        %373 = vst [vmem:[%s370] sm:$0xff] %v372
        %s374 = sadd.s32 %s356, 3
        %s375 = smul.u32 %s374, 8
        %s376 = scalar_lea.vmem [#allocation2], %s375
        %v377 = vld [vmem:[%s376] sm:$0xff]
        %v378 = vadd.f32 %v377, %v355
        %379 = vst [vmem:[%s376] sm:$0xff] %v378
        %p380 = scmp.eq.s32.totalorder %s21, 2
        // Predicated region
        $region33: #{text_seg_loss.1} parent=27 // pred_check
          %p381 = pneg %p380
        $region34: #{text_seg_loss.1} parent=27 // pred_check_branch
          %383 = sbr.rel (%p381) target = $region36
        $region35: #{text_seg_loss.1} parent=27 // pred_region
          %v384 = vld [vmem:[#allocation2] sm:$0xff]
          %385 = vadd.xlane.f32.xlu0 %v384
          %v386 = vpop.xlane.xlu0 %385
          %v387 = vrot.slane %v386, 4
          %v388 = vadd.f32 %v386, %v387
          %v389 = vrot.slane %v388, 2
          %v390 = vadd.f32 %v388, %v389
          %v391 = vrot.slane %v390, 1
          %v392 = vadd.f32 %v390, %v391
          %s393 = vtos %v392
          %s394 = scalar_lea.smem [#allocation5], 0
          %395 = sst [smem:[%s394]] %s393
          %s396 = scalar_lea.vmem [#allocation2], 8
          %v397 = vld [vmem:[%s396] sm:$0xff]
          %398 = vadd.xlane.f32.xlu0 %v397
          %v399 = vpop.xlane.xlu0 %398
          %v400 = vrot.slane %v399, 4
          %v401 = vadd.f32 %v399, %v400
          %v402 = vrot.slane %v401, 2
          %v403 = vadd.f32 %v401, %v402
          %v404 = vrot.slane %v403, 1
          %v405 = vadd.f32 %v403, %v404
          %s406 = vtos %v405
          %s407 = scalar_lea.smem [#allocation5], 1
          %408 = sst [smem:[%s407]] %s406
          %s409 = scalar_lea.vmem [#allocation2], 16
          %v410 = vld [vmem:[%s409] sm:$0xff]
          %411 = vadd.xlane.f32.xlu0 %v410
          %v412 = vpop.xlane.xlu0 %411
          %v413 = vrot.slane %v412, 4
          %v414 = vadd.f32 %v412, %v413
          %v415 = vrot.slane %v414, 2
          %v416 = vadd.f32 %v414, %v415
          %v417 = vrot.slane %v416, 1
          %v418 = vadd.f32 %v416, %v417
          %s419 = vtos %v418
          %s420 = scalar_lea.smem [#allocation5], 2
          %421 = sst [smem:[%s420]] %s419
          %s422 = scalar_lea.vmem [#allocation2], 24
          %v423 = vld [vmem:[%s422] sm:$0xff]
          %424 = vadd.xlane.f32.xlu0 %v423
          %v425 = vpop.xlane.xlu0 %424
          %v426 = vrot.slane %v425, 4
          %v427 = vadd.f32 %v425, %v426
          %v428 = vrot.slane %v427, 2
          %v429 = vadd.f32 %v427, %v428
          %v430 = vrot.slane %v429, 1
          %v431 = vadd.f32 %v429, %v430
          %s432 = vtos %v431
          %s433 = scalar_lea.smem [#allocation5], 3
          %434 = sst [smem:[%s433]] %s432
          %s435 = scalar_lea.vmem [#allocation2], 32
          %v436 = vld [vmem:[%s435] sm:$0xff]
          %437 = vadd.xlane.f32.xlu0 %v436
          %v438 = vpop.xlane.xlu0 %437
          %v439 = vrot.slane %v438, 4
          %v440 = vadd.f32 %v438, %v439
          %v441 = vrot.slane %v440, 2
          %v442 = vadd.f32 %v440, %v441
          %v443 = vrot.slane %v442, 1
          %v444 = vadd.f32 %v442, %v443
          %s445 = vtos %v444
          %s446 = scalar_lea.smem [#allocation5], 128
          %447 = sst [smem:[%s446]] %s445
          %s448 = scalar_lea.vmem [#allocation2], 40
          %v449 = vld [vmem:[%s448] sm:$0xff]
          %450 = vadd.xlane.f32.xlu0 %v449
          %v451 = vpop.xlane.xlu0 %450
          %v452 = vrot.slane %v451, 4
          %v453 = vadd.f32 %v451, %v452
          %v454 = vrot.slane %v453, 2
          %v455 = vadd.f32 %v453, %v454
          %v456 = vrot.slane %v455, 1
          %v457 = vadd.f32 %v455, %v456
          %s458 = vtos %v457
          %s459 = scalar_lea.smem [#allocation5], 129
          %460 = sst [smem:[%s459]] %s458
          %s461 = scalar_lea.vmem [#allocation2], 48
          %v462 = vld [vmem:[%s461] sm:$0xff]
          %463 = vadd.xlane.f32.xlu0 %v462
          %v464 = vpop.xlane.xlu0 %463
          %v465 = vrot.slane %v464, 4
          %v466 = vadd.f32 %v464, %v465
          %v467 = vrot.slane %v466, 2
          %v468 = vadd.f32 %v466, %v467
          %v469 = vrot.slane %v468, 1
          %v470 = vadd.f32 %v468, %v469
          %s471 = vtos %v470
          %s472 = scalar_lea.smem [#allocation5], 130
          %473 = sst [smem:[%s472]] %s471
          %s474 = scalar_lea.vmem [#allocation2], 56
          %v475 = vld [vmem:[%s474] sm:$0xff]
          %476 = vadd.xlane.f32.xlu0 %v475
          %v477 = vpop.xlane.xlu0 %476
          %v478 = vrot.slane %v477, 4
          %v479 = vadd.f32 %v477, %v478
          %v480 = vrot.slane %v479, 2
          %v481 = vadd.f32 %v479, %v480
          %v482 = vrot.slane %v481, 1
          %v483 = vadd.f32 %v481, %v482
          %s484 = vtos %v483
          %s485 = scalar_lea.smem [#allocation5], 131
          %486 = sst [smem:[%s485]] %s484
          %s487 = scalar_lea.vmem [#allocation2], 64
          %v488 = vld [vmem:[%s487] sm:$0xff]
          %489 = vadd.xlane.f32.xlu0 %v488
          %v490 = vpop.xlane.xlu0 %489
          %v491 = vrot.slane %v490, 4
          %v492 = vadd.f32 %v490, %v491
          %v493 = vrot.slane %v492, 2
          %v494 = vadd.f32 %v492, %v493
          %v495 = vrot.slane %v494, 1
          %v496 = vadd.f32 %v494, %v495
          %s497 = vtos %v496
          %s498 = scalar_lea.smem [#allocation5], 256
          %499 = sst [smem:[%s498]] %s497
          %s500 = scalar_lea.vmem [#allocation2], 72
          %v501 = vld [vmem:[%s500] sm:$0xff]
          %502 = vadd.xlane.f32.xlu0 %v501
          %v503 = vpop.xlane.xlu0 %502
          %v504 = vrot.slane %v503, 4
          %v505 = vadd.f32 %v503, %v504
          %v506 = vrot.slane %v505, 2
          %v507 = vadd.f32 %v505, %v506
          %v508 = vrot.slane %v507, 1
          %v509 = vadd.f32 %v507, %v508
          %s510 = vtos %v509
          %s511 = scalar_lea.smem [#allocation5], 257
          %512 = sst [smem:[%s511]] %s510
          %s513 = scalar_lea.vmem [#allocation2], 80
          %v514 = vld [vmem:[%s513] sm:$0xff]
          %515 = vadd.xlane.f32.xlu0 %v514
          %v516 = vpop.xlane.xlu0 %515
          %v517 = vrot.slane %v516, 4
          %v518 = vadd.f32 %v516, %v517
          %v519 = vrot.slane %v518, 2
          %v520 = vadd.f32 %v518, %v519
          %v521 = vrot.slane %v520, 1
          %v522 = vadd.f32 %v520, %v521
          %s523 = vtos %v522
          %s524 = scalar_lea.smem [#allocation5], 258
          %525 = sst [smem:[%s524]] %s523
          %s526 = scalar_lea.vmem [#allocation2], 88
          %v527 = vld [vmem:[%s526] sm:$0xff]
          %528 = vadd.xlane.f32.xlu0 %v527
          %v529 = vpop.xlane.xlu0 %528
          %v530 = vrot.slane %v529, 4
          %v531 = vadd.f32 %v529, %v530
          %v532 = vrot.slane %v531, 2
          %v533 = vadd.f32 %v531, %v532
          %v534 = vrot.slane %v533, 1
          %v535 = vadd.f32 %v533, %v534
          %s536 = vtos %v535
          %s537 = scalar_lea.smem [#allocation5], 259
          %538 = sst [smem:[%s537]] %s536
        $region36: #{text_seg_loss.1} parent=27 // pred_fallthru
          _
        // Predicated region
        $region37: #{text_seg_loss.1} parent=27 // pred_check
          %p539 = pneg %p86
        $region38: #{text_seg_loss.1} parent=27 // pred_check_branch
          %541 = sbr.rel (%p539) target = $region40
        $region39: #{text_seg_loss.1} parent=27 // pred_region
          %s543 = ssub.s32 64, 64
          %544 = vsyncadd [#allocation6], %s543
          %s546 = sshll.u32 %s3, 4
          %s547 = int_to_ptr.vmem [resolvable:$true] %s546
          %549 = dma.smem_to_vmem [#allocation5], 64, %s547, [#allocation6]
        $region40: #{text_seg_loss.1} parent=27 // pred_fallthru
          _
        // Predicated region
        $region41: #{text_seg_loss.1} parent=27 // pred_check
          %p550 = pneg %p86
        $region42: #{text_seg_loss.1} parent=27 // pred_check_branch
          %552 = sbr.rel (%p550) target = $region44
        $region43: #{text_seg_loss.1} parent=27 // pred_region
          %553 = dma.done [#allocation6], 64
        $region44: #{text_seg_loss.1} parent=27 // pred_fallthru
          _
        %554 = sfence
      $region28: #{text_seg_loss.1} parent=5 // pred_fallthru
        _
      %p555 = scmp.le.s32.totalorder 2, %s16
      // Predicated region
      $region45: #{text_seg_loss.1} parent=5 // pred_check
        %p556 = pneg %p555
      $region46: #{text_seg_loss.1} parent=5 // pred_check_branch
        %558 = sbr.rel (%p556) target = $region48
      $region47: #{text_seg_loss.1} parent=5 // pred_region
        %s559 = ssub.s32 %s16, 2
      $region48: #{text_seg_loss.1} parent=5 // pred_fallthru
        _
    $region6: #{text_seg_loss.1} parent=1 // loop_footer
      %s20 = sadd.s32 1, %s16
    $region7: #{text_seg_loss.1} parent=1 // loop_footer_branch
      %15 = sbr.rel target = $region3
    $region8: #{text_seg_loss.1} parent=1 // loop_exit
      _
    %560 = vsyncpa [#allocation6], 1
    %s561 = scalar_lea.sflag [#allocation6], 1
    %562 = vsyncpa %s561, 1

</llo_original>
